<compile_context>
chip_gen: v7x
topology: tpu7x:2x2x1
jax: 0.10.0
libtpu: 0.0.40
codegen_flags: <defaults>
</compile_context>

<pallas_src>
import jax
import jax.numpy as jnp
from jax.experimental import pallas as pl
from jax.experimental.pallas import tpu as pltpu


def _round_up(x, m):
    return (x + m - 1) // m * m


# --------------------------------------------------------------------------------------
# Kernel: one grid step == one decode step.  Weights / queries / e_q are VMEM-resident
# (constant index maps); hidden state is carried across steps in the h_acc VMEM scratch.
# --------------------------------------------------------------------------------------
def decoder_kernel(emb_ref, q_ref, eq_ref, key_ref,
                   wh_ref, wih_ref, wo_ref, bias_ref,
                   logits_ref, hid_ref, h_acc):
    t = pl.program_id(0)
    Hg = key_ref.shape[-1]            # per-gate lane group (dec_hid padded to 128)
    out_pad = logits_ref.shape[-1]
    w_dtype = wih_ref.dtype           # matmul weight dtype (bf16); accumulation stays f32

    @pl.when(t == 0)
    def _():
        h_acc[...] = key_ref[...]     # zero-padded initial hidden (B, Hg)

    emb = emb_ref[0]                  # (B, emb)   embedded token for this step (f32)
    h = h_acc[...]                    # (B, Hg)    previous hidden, zeros in pad lanes

    biases = bias_ref[...]            # (5, W) f32: rows [ba, va, b_ih, b_hh, b_out]
    ba = biases[0:1, 0:Hg]
    va = biases[1:2, 0:Hg]
    bih = biases[2:3, 0:3 * Hg]
    bhh = biases[3:4, 0:3 * Hg]
    bo = biases[4:5, 0:out_pad]

    # ---- single fused dot for everything multiplied by h (shared-LHS fusion):
    #      [ e_k | gh_r | gh_z | gh_n ] = h @ [ Wa_k | Whh_r | Whh_z | Whh_n ]
    hh = jnp.dot(h.astype(w_dtype), wh_ref[...],
                 preferred_element_type=jnp.float32)                       # (B, 4*Hg)
    e_k = hh[:, 0:Hg]                                                       # (B, Hg)
    gh = hh[:, Hg:4 * Hg] + bhh                                             # (B, 3*Hg)

    # ---- attention: softmax_S( v . tanh(Wa_q q_s + Wa_k h + ba) )
    #      (pad lanes of e_q / e_k / ba are 0 and va is 0 there -> scores unaffected)
    energy = jnp.tanh(eq_ref[...].astype(jnp.float32)
                      + e_k[:, None, :] + ba[None, :, :])                   # (B, S, Hg)
    scores = jnp.sum(energy * va[None, :, :], axis=-1)                      # (B, S)
    m = jnp.max(scores, axis=-1, keepdims=True)
    p = jnp.exp(scores - m)
    a = p * pl.reciprocal(jnp.sum(p, axis=-1, keepdims=True), approx=True)  # softmax (B, S)

    # ---- weighted = bmm(a, queries)
    weighted = jnp.sum(a[:, :, None] * q_ref[...], axis=1)                  # (B, enc)

    # ---- single-step GRU, x = [embedded | weighted] lane-concat, one dot vs fused W_ih
    x_w = jnp.concatenate([emb, weighted], axis=-1).astype(w_dtype)         # (B, emb+enc)
    gi = jnp.dot(x_w, wih_ref[...], preferred_element_type=jnp.float32) + bih   # (B, 3*Hg)
    r = jax.nn.sigmoid(gi[:, 0:Hg] + gh[:, 0:Hg])
    z = jax.nn.sigmoid(gi[:, Hg:2 * Hg] + gh[:, Hg:2 * Hg])
    n = jnp.tanh(gi[:, 2 * Hg:3 * Hg] + r * gh[:, 2 * Hg:3 * Hg])
    h_new = (1.0 - z) * n + z * h                                           # (B, Hg); pad lanes stay 0

    # ---- output = W_out . cat(output, weighted, embedded), one dot vs fused (lane-padded) W_out
    cat_w = jnp.concatenate([h_new, weighted, emb], axis=-1).astype(w_dtype)  # (B, Hg+enc+emb)
    logits = jnp.dot(cat_w, wo_ref[...], preferred_element_type=jnp.float32) + bo

    logits_ref[0] = logits
    h_acc[...] = h_new        # carry hidden to the next grid step
    hid_ref[...] = h_new      # resident output block (constant index) -> one HBM writeback


# --------------------------------------------------------------------------------------
# Wrappers
# --------------------------------------------------------------------------------------
def decoder_decode(input_ids_seq, queries, key, params):
    """T teacher-forced decode steps inside ONE pallas_call (grid=(T,)).

    input_ids_seq: (T, B) int32; queries: (B, S, enc) f32; key: (B, H) f32.
    Returns (logits (T, B, output_dim) f32, final hidden (B, H) f32).
    """
    d = params["dims"]
    H, Hg, out_pad = d["dec_hid"], d["hg"], d["out_pad"]
    output_dim, emb_dim = d["output_dim"], d["emb_dim"]
    T, B = input_ids_seq.shape
    S, enc = queries.shape[1], queries.shape[2]

    # Glue outside the kernel (eval-mode dropout == identity):
    #  * one embedding gather for the whole token sequence,
    #  * hoisted step-invariant query projection e_q = queries @ Wa_q, stored bf16,
    #  * initial hidden zero-padded to the Hg lane group.
    embedded = jnp.take(params["embedding"], input_ids_seq.reshape(-1), axis=0)
    embedded = embedded.reshape(T, B, emb_dim)
    wa_q = params["wa_q"]
    e_q = jnp.dot(queries.reshape(B * S, enc).astype(wa_q.dtype), wa_q,
                  preferred_element_type=jnp.float32)
    e_q = e_q.astype(jnp.bfloat16).reshape(B, S, Hg)
    key_pad = jnp.zeros((B, Hg), jnp.float32).at[:, :H].set(key)

    args = (embedded, queries, e_q, key_pad,
            params["wh"], params["wih"], params["wo"], params["bias_pack"])

    def const(shape):  # DMA'd once, VMEM-resident for all T steps
        return pl.BlockSpec(shape, lambda t: (0,) * len(shape))

    grid_spec = pltpu.PrefetchScalarGridSpec(
        num_scalar_prefetch=0,
        grid=(T,),
        in_specs=[
            pl.BlockSpec((1, B, emb_dim), lambda t: (t, 0, 0)),   # per-step embedded token
            const((B, S, enc)),                                   # queries
            const((B, S, Hg)),                                    # e_q (bf16)
            const((B, Hg)),                                       # padded initial hidden
            const(params["wh"].shape),                            # [Wa_k | Whh] fused
            const(params["wih"].shape),                           # W_ih (gates in Hg lane groups)
            const(params["wo"].shape),                            # W_out (lane-padded)
            const(params["bias_pack"].shape),                     # packed small params
        ],
        out_specs=(
            pl.BlockSpec((1, B, out_pad), lambda t: (t, 0, 0)),   # logits per step (lane-dense)
            pl.BlockSpec((B, Hg), lambda t: (0, 0)),              # final hidden (lane-dense)
        ),
        scratch_shapes=[pltpu.VMEM((B, Hg), jnp.float32)],        # carried hidden state
    )

    logits_pad, hidden_pad = pl.pallas_call(
        decoder_kernel,
        out_shape=(jax.ShapeDtypeStruct((T, B, out_pad), jnp.float32),
                   jax.ShapeDtypeStruct((B, Hg), jnp.float32)),
        grid_spec=grid_spec,
        compiler_params=pltpu.CompilerParams(
            dimension_semantics=("arbitrary",)),   # step axis is a recurrence
    )(*args)

    return logits_pad[:, :, :output_dim], hidden_pad[:, :H]


def decoder_forward(input_ids, queries, key, params):
    """Single decode step, matching the PyTorch Decoder.forward (eval mode)."""
    logits_seq, hidden = decoder_decode(input_ids[None, :], queries, key, params)
    return logits_seq[0], hidden


# --------------------------------------------------------------------------------------
# Parameter construction (PyTorch-layout init + repacking glue for the kernel)
# --------------------------------------------------------------------------------------
def init_params(rng, output_dim, emb_dim, enc_hid, dec_hid, weight_dtype=jnp.bfloat16):
    ks = jax.random.split(rng, 10)

    def u(k, shape, fan_in):
        bound = 1.0 / jnp.sqrt(float(fan_in))
        return jax.random.uniform(k, shape, jnp.float32, -bound, bound)

    H = dec_hid
    Hg = _round_up(H, 128)            # per-gate lane group -> aligned in-kernel slices
    out_pad = _round_up(output_dim, 128)

    # ---- PyTorch-layout parameters
    embedding = jax.random.normal(ks[0], (output_dim, emb_dim), jnp.float32)
    # attention: Linear(enc+dec -> dec) over cat((key, queries)); v: (dec,)
    wa = u(ks[1], (H, H + enc_hid), H + enc_hid)
    ba = u(ks[2], (H,), H + enc_hid)
    va = u(ks[3], (H,), H)
    # nn.GRU(enc+emb, dec): weight_ih (3H, emb+enc), x = cat(embedded, weighted); gates (r|z|n)
    w_ih = u(ks[4], (3 * H, emb_dim + enc_hid), H)
    w_hh = u(ks[5], (3 * H, H), H)
    b_ih = u(ks[6], (3 * H,), H)
    b_hh = u(ks[7], (3 * H,), H)
    # nn.Linear over cat((output, weighted, embedded)): input order [H ; enc ; emb]
    in_out = H + enc_hid + emb_dim
    w_out = u(ks[8], (output_dim, in_out), in_out)
    b_out = u(ks[9], (output_dim,), in_out)

    # ---- repack for the kernel (pure glue)
    def pad_gate_cols(w_t):        # (in, 3H) -> (in, 3*Hg), gate g at cols [g*Hg, g*Hg+H)
        out = jnp.zeros((w_t.shape[0], 3 * Hg), jnp.float32)
        for g in range(3):
            out = out.at[:, g * Hg:g * Hg + H].set(w_t[:, g * H:(g + 1) * H])
        return out

    def pad_gate_vec(b):
        out = jnp.zeros((3 * Hg,), jnp.float32)
        for g in range(3):
            out = out.at[g * Hg:g * Hg + H].set(b[g * H:(g + 1) * H])
        return out

    wa_k = wa[:, :H].T                       # (H, H)   key half, (in, out) layout
    wa_q_raw = wa[:, H:].T                   # (enc, H) queries half (host-side precompute)
    whh_t = pad_gate_cols(w_hh.T)            # (H, 3*Hg)
    wih = pad_gate_cols(w_ih.T)              # (emb+enc, 3*Hg)

    # fused shared-LHS weight: cols [ Wa_k | Whh_r | Whh_z | Whh_n ], rows padded H -> Hg
    wh = jnp.zeros((Hg, 4 * Hg), jnp.float32)
    wh = wh.at[:H, :H].set(wa_k)
    wh = wh.at[:H, Hg:].set(whh_t)

    # queries half of attention projection, output lanes padded H -> Hg
    wa_q = jnp.zeros((enc_hid, Hg), jnp.float32).at[:, :H].set(wa_q_raw)

    # fused output projection: rows [h (padded to Hg) ; weighted ; embedded], cols -> out_pad
    wo = jnp.zeros((Hg + enc_hid + emb_dim, out_pad), jnp.float32)
    wo = wo.at[:H, :output_dim].set(w_out[:, :H].T)
    wo = wo.at[Hg:Hg + enc_hid, :output_dim].set(w_out[:, H:H + enc_hid].T)
    wo = wo.at[Hg + enc_hid:, :output_dim].set(w_out[:, H + enc_hid:].T)

    W = max(out_pad, 3 * Hg)
    bias_pack = jnp.zeros((5, W), jnp.float32)
    bias_pack = bias_pack.at[0, :H].set(ba)
    bias_pack = bias_pack.at[1, :H].set(va)
    bias_pack = bias_pack.at[2, :3 * Hg].set(pad_gate_vec(b_ih))
    bias_pack = bias_pack.at[3, :3 * Hg].set(pad_gate_vec(b_hh))
    bias_pack = bias_pack.at[4, :output_dim].set(b_out)

    return {
        "embedding": embedding,
        "wa_q": wa_q.astype(weight_dtype),
        "wh": wh.astype(weight_dtype),
        "wih": wih.astype(weight_dtype),
        "wo": wo.astype(weight_dtype),
        "bias_pack": bias_pack,
        "dims": {"output_dim": output_dim, "emb_dim": emb_dim, "enc_hid": enc_hid,
                 "dec_hid": H, "hg": Hg, "out_pad": out_pad},
    }


# --------------------------------------------------------------------------------------
# Plain-JAX reference (same bf16-rounded weights, padding stripped, f32 math)
# --------------------------------------------------------------------------------------
def reference_step(input_ids, queries, key, params):
    d = params["dims"]
    H, Hg, enc = d["dec_hid"], d["hg"], d["enc_hid"]
    output_dim = d["output_dim"]
    B, S, _ = queries.shape
    f32 = lambda a: a.astype(jnp.float32)

    wh = f32(params["wh"])
    wa_k = wh[:H, :H]
    whh = jnp.concatenate([wh[:H, Hg + g * Hg:Hg + g * Hg + H] for g in range(3)], axis=1)
    wih = jnp.concatenate([f32(params["wih"])[:, g * Hg:g * Hg + H] for g in range(3)], axis=1)
    wa_q = f32(params["wa_q"])[:, :H]
    wo_p = f32(params["wo"])
    wo = jnp.concatenate([wo_p[:H], wo_p[Hg:Hg + enc], wo_p[Hg + enc:]], axis=0)[:, :output_dim]
    bias = params["bias_pack"]
    ba, va = bias[0, :H], bias[1, :H]
    bih = jnp.concatenate([bias[2, g * Hg:g * Hg + H] for g in range(3)])
    bhh = jnp.concatenate([bias[3, g * Hg:g * Hg + H] for g in range(3)])
    bo = bias[4, :output_dim]

    emb = jnp.take(params["embedding"], input_ids, axis=0)
    e_k = key @ wa_k
    e_q = (queries.reshape(B * S, enc) @ wa_q).reshape(B, S, H)
    energy = jnp.tanh(e_q + e_k[:, None, :] + ba)
    scores = jnp.sum(energy * va, axis=-1)
    a = jax.nn.softmax(scores, axis=-1)
    weighted = jnp.einsum("bs,bse->be", a, queries)

    x = jnp.concatenate([emb, weighted], axis=1)
    gi = x @ wih + bih
    gh = key @ whh + bhh
    r = jax.nn.sigmoid(gi[:, :H] + gh[:, :H])
    z = jax.nn.sigmoid(gi[:, H:2 * H] + gh[:, H:2 * H])
    n = jnp.tanh(gi[:, 2 * H:] + r * gh[:, 2 * H:])
    h_new = (1.0 - z) * n + z * key

    cat = jnp.concatenate([h_new, weighted, emb], axis=1)
    logits = cat @ wo + bo
    return logits, h_new


def reference_decode(input_ids_seq, queries, key, params):
    logits_all, h = [], key
    for t in range(input_ids_seq.shape[0]):
        logits, h = reference_step(input_ids_seq[t], queries, h, params)
        logits_all.append(logits)
    return jnp.stack(logits_all, axis=0), h


if __name__ == "__main__":
    B, S, T = 2, 8, 4
    output_dim, emb_dim, enc_hid, dec_hid = 64, 16, 32, 32

    root = jax.random.PRNGKey(0)
    kp, ki, kq, kk = jax.random.split(root, 4)

    params = init_params(kp, output_dim, emb_dim, enc_hid, dec_hid)
    ids_seq = jax.random.randint(ki, (T, B), 0, output_dim, dtype=jnp.int32)
    queries = jax.random.normal(kq, (B, S, enc_hid), jnp.float32)
    key = jax.random.normal(kk, (B, dec_hid), jnp.float32)

    # ---- single step (matches Decoder.forward)
    logits, hidden = decoder_forward(ids_seq[0], queries, key, params)
    jax.block_until_ready((logits, hidden))
    assert logits.shape == (B, output_dim) and hidden.shape == (B, dec_hid)
    assert bool(jnp.all(jnp.isfinite(logits))) and bool(jnp.all(jnp.isfinite(hidden)))
    ref_logits, ref_hidden = reference_step(ids_seq[0], queries, key, params)
    assert bool(jnp.allclose(logits, ref_logits, rtol=5e-2, atol=5e-2))
    assert bool(jnp.allclose(hidden, ref_hidden, rtol=5e-2, atol=5e-2))

    # ---- T-step teacher-forced decode, whole loop inside one pallas_call
    logits_seq, hidden_T = decoder_decode(ids_seq, queries, key, params)
    jax.block_until_ready((logits_seq, hidden_T))
    assert logits_seq.shape == (T, B, output_dim) and hidden_T.shape == (B, dec_hid)
    assert bool(jnp.all(jnp.isfinite(logits_seq)))
    ref_seq, ref_hT = reference_decode(ids_seq, queries, key, params)
    assert bool(jnp.allclose(logits_seq, ref_seq, rtol=5e-2, atol=5e-2))
    assert bool(jnp.allclose(hidden_T, ref_hT, rtol=5e-2, atol=5e-2))

    print("KERNEL_OK")
</pallas_src>

<mosaic_0001>
module attributes {stable_mosaic.version = 11 : i64} {
  func.func @decoder_kernel(%arg0: i32, %arg1: memref<1x2x16xf32, #tpu.memory_space<vmem>>, %arg2: memref<2x8x32xf32, #tpu.memory_space<vmem>>, %arg3: memref<2x8x128xbf16, #tpu.memory_space<vmem>>, %arg4: memref<2x128xf32, #tpu.memory_space<vmem>>, %arg5: memref<128x512xbf16, #tpu.memory_space<vmem>>, %arg6: memref<48x384xbf16, #tpu.memory_space<vmem>>, %arg7: memref<176x128xbf16, #tpu.memory_space<vmem>>, %arg8: memref<5x384xf32, #tpu.memory_space<vmem>>, %arg9: memref<1x2x128xf32, #tpu.memory_space<vmem>>, %arg10: memref<2x128xf32, #tpu.memory_space<vmem>>, %arg11: memref<2x128xf32, #tpu.memory_space<vmem>>) attributes {dimension_semantics = [#tpu.dimension_semantics<arbitrary>], iteration_bounds = array<i64: 1>, scalar_prefetch = 0 : i64, scratch_operands = 1 : i64, tpu.core_type = #tpu.core_type<tc>, window_params = [{transform_indices = @transform_0, window_bounds = array<i64: 1, 2, 16>}, {pipeline_mode = #tpu.pipeline_mode<synchronous>, transform_indices = @transform_1, window_bounds = array<i64: 2, 8, 32>}, {pipeline_mode = #tpu.pipeline_mode<synchronous>, transform_indices = @transform_2, window_bounds = array<i64: 2, 8, 128>}, {pipeline_mode = #tpu.pipeline_mode<synchronous>, transform_indices = @transform_3, window_bounds = array<i64: 2, 128>}, {pipeline_mode = #tpu.pipeline_mode<synchronous>, transform_indices = @transform_4, window_bounds = array<i64: 128, 512>}, {pipeline_mode = #tpu.pipeline_mode<synchronous>, transform_indices = @transform_5, window_bounds = array<i64: 48, 384>}, {pipeline_mode = #tpu.pipeline_mode<synchronous>, transform_indices = @transform_6, window_bounds = array<i64: 176, 128>}, {pipeline_mode = #tpu.pipeline_mode<synchronous>, transform_indices = @transform_7, window_bounds = array<i64: 5, 384>}, {transform_indices = @transform_8, window_bounds = array<i64: 1, 2, 128>}, {pipeline_mode = #tpu.pipeline_mode<synchronous>, transform_indices = @transform_9, window_bounds = array<i64: 2, 128>}]} {
    %c0_i32 = arith.constant 0 : i32
    %0 = arith.cmpi eq, %arg0, %c0_i32 : i32
    %1 = arith.extui %0 : i1 to i32
    %c0_i32_0 = arith.constant 0 : i32
    %2 = arith.cmpi ne, %1, %c0_i32_0 : i32
    scf.if %2 {
      %c0_35 = arith.constant 0 : index
      %c0_36 = arith.constant 0 : index
      %90 = vector.load %arg4[%c0_35, %c0_36] : memref<2x128xf32, #tpu.memory_space<vmem>>, vector<2x128xf32>
      %c0_37 = arith.constant 0 : index
      %c0_38 = arith.constant 0 : index
      %91 = vector.load %arg11[%c0_37, %c0_38] : memref<2x128xf32, #tpu.memory_space<vmem>>, vector<2x128xf32>
      tpu.vector_store %arg11[%c0_37, %c0_38], %90 {strides = array<i32>} : memref<2x128xf32, #tpu.memory_space<vmem>>, vector<2x128xf32>,
    } else {
    }
    %c0 = arith.constant 0 : index
    %c0_1 = arith.constant 0 : index
    %c0_2 = arith.constant 0 : index
    %3 = vector.load %arg1[%c0, %c0_1, %c0_2] : memref<1x2x16xf32, #tpu.memory_space<vmem>>, vector<1x2x16xf32>
    %4 = vector.shape_cast %3 : vector<1x2x16xf32> to vector<2x16xf32>
    %c0_3 = arith.constant 0 : index
    %c0_4 = arith.constant 0 : index
    %5 = vector.load %arg11[%c0_3, %c0_4] : memref<2x128xf32, #tpu.memory_space<vmem>>, vector<2x128xf32>
    %c0_5 = arith.constant 0 : index
    %c0_6 = arith.constant 0 : index
    %6 = vector.load %arg8[%c0_5, %c0_6] : memref<5x384xf32, #tpu.memory_space<vmem>>, vector<5x384xf32>
    %7 = vector.extract_strided_slice %6 {offsets = [0, 0], sizes = [1, 128], strides = [1, 1]} : vector<5x384xf32> to vector<1x128xf32>
    %8 = vector.extract_strided_slice %6 {offsets = [1, 0], sizes = [1, 128], strides = [1, 1]} : vector<5x384xf32> to vector<1x128xf32>
    %9 = vector.extract_strided_slice %6 {offsets = [2, 0], sizes = [1, 384], strides = [1, 1]} : vector<5x384xf32> to vector<1x384xf32>
    %10 = vector.extract_strided_slice %6 {offsets = [3, 0], sizes = [1, 384], strides = [1, 1]} : vector<5x384xf32> to vector<1x384xf32>
    %11 = vector.extract_strided_slice %6 {offsets = [4, 0], sizes = [1, 128], strides = [1, 1]} : vector<5x384xf32> to vector<1x128xf32>
    %12 = arith.truncf %5 : vector<2x128xf32> to vector<2x128xbf16>
    %c0_7 = arith.constant 0 : index
    %c0_8 = arith.constant 0 : index
    %13 = vector.load %arg5[%c0_7, %c0_8] : memref<128x512xbf16, #tpu.memory_space<vmem>>, vector<128x512xbf16>
    %cst = arith.constant dense<0.000000e+00> : vector<2x512xf32>
    %14 = tpu.matmul %12, %13, %cst {dimension_numbers = #tpu.dot_dimension_numbers<[1], [0], [0], [1], [0, 0, 1, 1], [], []>} : vector<2x128xbf16>, vector<128x512xbf16>, vector<2x512xf32> -> vector<2x512xf32>
    %15 = vector.extract_strided_slice %14 {offsets = [0, 0], sizes = [2, 128], strides = [1, 1]} : vector<2x512xf32> to vector<2x128xf32>
    %16 = vector.extract_strided_slice %14 {offsets = [0, 128], sizes = [2, 384], strides = [1, 1]} : vector<2x512xf32> to vector<2x384xf32>
    %17 = vector.broadcast %10 : vector<1x384xf32> to vector<2x384xf32>
    %18 = arith.addf %16, %17 : vector<2x384xf32>
    %c0_9 = arith.constant 0 : index
    %c0_10 = arith.constant 0 : index
    %c0_11 = arith.constant 0 : index
    %19 = vector.load %arg3[%c0_9, %c0_10, %c0_11] : memref<2x8x128xbf16, #tpu.memory_space<vmem>>, vector<2x8x128xbf16>
    %20 = arith.extf %19 : vector<2x8x128xbf16> to vector<2x8x128xf32>
    %21 = vector.shape_cast %15 : vector<2x128xf32> to vector<2x1x128xf32>
    %22 = vector.broadcast %21 : vector<2x1x128xf32> to vector<2x8x128xf32>
    %23 = arith.addf %20, %22 : vector<2x8x128xf32>
    %24 = vector.shape_cast %7 : vector<1x128xf32> to vector<1x1x128xf32>
    %25 = vector.broadcast %24 : vector<1x1x128xf32> to vector<2x8x128xf32>
    %26 = arith.addf %23, %25 : vector<2x8x128xf32>
    %27 = math.tanh %26 : vector<2x8x128xf32>
    %28 = vector.shape_cast %8 : vector<1x128xf32> to vector<1x1x128xf32>
    %29 = vector.broadcast %28 : vector<1x1x128xf32> to vector<2x8x128xf32>
    %30 = arith.mulf %27, %29 : vector<2x8x128xf32>
    %cst_12 = arith.constant dense<0.000000e+00> : vector<2x8xf32>
    %31 = vector.multi_reduction <add>, %30, %cst_12 [2] : vector<2x8x128xf32> to vector<2x8xf32>
    %cst_13 = arith.constant dense<0xFF800000> : vector<2xf32>
    %32 = vector.multi_reduction <maximumf>, %31, %cst_13 [1] : vector<2x8xf32> to vector<2xf32>
    %33 = vector.shape_cast %32 : vector<2xf32> to vector<2x1xf32>
    %34 = vector.broadcast %33 : vector<2x1xf32> to vector<2x8xf32>
    %35 = arith.subf %31, %34 : vector<2x8xf32>
    %36 = math.exp %35 : vector<2x8xf32>
    %cst_14 = arith.constant dense<0.000000e+00> : vector<2xf32>
    %37 = vector.multi_reduction <add>, %36, %cst_14 [1] : vector<2x8xf32> to vector<2xf32>
    %38 = vector.shape_cast %37 : vector<2xf32> to vector<2x1xf32>
    %39 = tpu.reciprocal %38 {approx = true} : vector<2x1xf32> -> vector<2x1xf32>
    %40 = vector.broadcast %39 : vector<2x1xf32> to vector<2x8xf32>
    %41 = arith.mulf %36, %40 : vector<2x8xf32>
    %42 = vector.shape_cast %41 : vector<2x8xf32> to vector<2x8x1xf32>
    %c0_15 = arith.constant 0 : index
    %c0_16 = arith.constant 0 : index
    %c0_17 = arith.constant 0 : index
    %43 = vector.load %arg2[%c0_15, %c0_16, %c0_17] : memref<2x8x32xf32, #tpu.memory_space<vmem>>, vector<2x8x32xf32>
    %44 = vector.broadcast %42 : vector<2x8x1xf32> to vector<2x8x32xf32>
    %45 = arith.mulf %44, %43 : vector<2x8x32xf32>
    %cst_18 = arith.constant dense<0.000000e+00> : vector<2x32xf32>
    %46 = vector.multi_reduction <add>, %45, %cst_18 [1] : vector<2x8x32xf32> to vector<2x32xf32>
    %47 = tpu.concatenate %4, %46 in 1 : vector<2x16xf32>, vector<2x32xf32> -> vector<2x48xf32>
    %48 = arith.truncf %47 : vector<2x48xf32> to vector<2x48xbf16>
    %c0_19 = arith.constant 0 : index
    %c0_20 = arith.constant 0 : index
    %49 = vector.load %arg6[%c0_19, %c0_20] : memref<48x384xbf16, #tpu.memory_space<vmem>>, vector<48x384xbf16>
    %cst_21 = arith.constant dense<0.000000e+00> : vector<2x384xf32>
    %50 = tpu.matmul %48, %49, %cst_21 {dimension_numbers = #tpu.dot_dimension_numbers<[1], [0], [0], [1], [0, 0, 1, 1], [], []>} : vector<2x48xbf16>, vector<48x384xbf16>, vector<2x384xf32> -> vector<2x384xf32>
    %51 = vector.broadcast %9 : vector<1x384xf32> to vector<2x384xf32>
    %52 = arith.addf %50, %51 : vector<2x384xf32>
    %53 = vector.extract_strided_slice %52 {offsets = [0, 0], sizes = [2, 128], strides = [1, 1]} : vector<2x384xf32> to vector<2x128xf32>
    %54 = vector.extract_strided_slice %18 {offsets = [0, 0], sizes = [2, 128], strides = [1, 1]} : vector<2x384xf32> to vector<2x128xf32>
    %55 = arith.addf %53, %54 : vector<2x128xf32>
    %56 = arith.negf %55 : vector<2x128xf32>
    %57 = math.exp %56 : vector<2x128xf32>
    %cst_22 = arith.constant 1.000000e+00 : f32
    %58 = vector.broadcast %cst_22 : f32 to vector<2x128xf32>
    %59 = arith.addf %58, %57 : vector<2x128xf32>
    %60 = arith.divf %58, %59 : vector<2x128xf32>
    %61 = vector.extract_strided_slice %52 {offsets = [0, 128], sizes = [2, 128], strides = [1, 1]} : vector<2x384xf32> to vector<2x128xf32>
    %62 = vector.extract_strided_slice %18 {offsets = [0, 128], sizes = [2, 128], strides = [1, 1]} : vector<2x384xf32> to vector<2x128xf32>
    %63 = arith.addf %61, %62 : vector<2x128xf32>
    %64 = arith.negf %63 : vector<2x128xf32>
    %65 = math.exp %64 : vector<2x128xf32>
    %cst_23 = arith.constant 1.000000e+00 : f32
    %66 = vector.broadcast %cst_23 : f32 to vector<2x128xf32>
    %67 = arith.addf %66, %65 : vector<2x128xf32>
    %68 = arith.divf %66, %67 : vector<2x128xf32>
    %69 = vector.extract_strided_slice %52 {offsets = [0, 256], sizes = [2, 128], strides = [1, 1]} : vector<2x384xf32> to vector<2x128xf32>
    %70 = vector.extract_strided_slice %18 {offsets = [0, 256], sizes = [2, 128], strides = [1, 1]} : vector<2x384xf32> to vector<2x128xf32>
    %71 = arith.mulf %60, %70 : vector<2x128xf32>
    %72 = arith.addf %69, %71 : vector<2x128xf32>
    %73 = math.tanh %72 : vector<2x128xf32>
    %cst_24 = arith.constant 1.000000e+00 : f32
    %74 = vector.broadcast %cst_24 : f32 to vector<2x128xf32>
    %75 = arith.subf %74, %68 : vector<2x128xf32>
    %76 = arith.mulf %75, %73 : vector<2x128xf32>
    %77 = arith.mulf %68, %5 : vector<2x128xf32>
    %78 = arith.addf %76, %77 : vector<2x128xf32>
    %79 = tpu.concatenate %78, %46, %4 in 1 : vector<2x128xf32>, vector<2x32xf32>, vector<2x16xf32> -> vector<2x176xf32>
    %80 = arith.truncf %79 : vector<2x176xf32> to vector<2x176xbf16>
    %c0_25 = arith.constant 0 : index
    %c0_26 = arith.constant 0 : index
    %81 = vector.load %arg7[%c0_25, %c0_26] : memref<176x128xbf16, #tpu.memory_space<vmem>>, vector<176x128xbf16>
    %cst_27 = arith.constant dense<0.000000e+00> : vector<2x128xf32>
    %82 = tpu.matmul %80, %81, %cst_27 {dimension_numbers = #tpu.dot_dimension_numbers<[1], [0], [0], [1], [0, 0, 1, 1], [], []>} : vector<2x176xbf16>, vector<176x128xbf16>, vector<2x128xf32> -> vector<2x128xf32>
    %83 = vector.broadcast %11 : vector<1x128xf32> to vector<2x128xf32>
    %84 = arith.addf %82, %83 : vector<2x128xf32>
    %c0_28 = arith.constant 0 : index
    %c0_29 = arith.constant 0 : index
    %c0_30 = arith.constant 0 : index
    %85 = vector.load %arg9[%c0_28, %c0_29, %c0_30] : memref<1x2x128xf32, #tpu.memory_space<vmem>>, vector<1x2x128xf32>
    %86 = vector.shape_cast %85 : vector<1x2x128xf32> to vector<2x128xf32>
    %87 = vector.shape_cast %84 : vector<2x128xf32> to vector<1x2x128xf32>
    tpu.vector_store %arg9[%c0_28, %c0_29, %c0_30], %87 {strides = array<i32>} : memref<1x2x128xf32, #tpu.memory_space<vmem>>, vector<1x2x128xf32>,
    %c0_31 = arith.constant 0 : index
    %c0_32 = arith.constant 0 : index
    %88 = vector.load %arg11[%c0_31, %c0_32] : memref<2x128xf32, #tpu.memory_space<vmem>>, vector<2x128xf32>
    tpu.vector_store %arg11[%c0_31, %c0_32], %78 {strides = array<i32>} : memref<2x128xf32, #tpu.memory_space<vmem>>, vector<2x128xf32>,
    %c0_33 = arith.constant 0 : index
    %c0_34 = arith.constant 0 : index
    %89 = vector.load %arg10[%c0_33, %c0_34] : memref<2x128xf32, #tpu.memory_space<vmem>>, vector<2x128xf32>
    tpu.vector_store %arg10[%c0_33, %c0_34], %78 {strides = array<i32>} : memref<2x128xf32, #tpu.memory_space<vmem>>, vector<2x128xf32>,
    return
  }
  func.func @transform_0(%arg0: i32) -> (i32, i32, i32) {
    %c0_i32 = arith.constant 0 : i32
    %c0_i32_0 = arith.constant 0 : i32
    %c0_i32_1 = arith.constant 0 : i32
    return %arg0, %c0_i32, %c0_i32_0 : i32, i32, i32
  }
  func.func @transform_1(%arg0: i32) -> (i32, i32, i32) {
    %c0_i32 = arith.constant 0 : i32
    %c0_i32_0 = arith.constant 0 : i32
    %c0_i32_1 = arith.constant 0 : i32
    %c0_i32_2 = arith.constant 0 : i32
    return %c0_i32, %c0_i32_0, %c0_i32_1 : i32, i32, i32
  }
  func.func @transform_2(%arg0: i32) -> (i32, i32, i32) {
    %c0_i32 = arith.constant 0 : i32
    %c0_i32_0 = arith.constant 0 : i32
    %c0_i32_1 = arith.constant 0 : i32
    %c0_i32_2 = arith.constant 0 : i32
    return %c0_i32, %c0_i32_0, %c0_i32_1 : i32, i32, i32
  }
  func.func @transform_3(%arg0: i32) -> (i32, i32) {
    %c0_i32 = arith.constant 0 : i32
    %c0_i32_0 = arith.constant 0 : i32
    %c0_i32_1 = arith.constant 0 : i32
    return %c0_i32, %c0_i32_0 : i32, i32
  }
  func.func @transform_4(%arg0: i32) -> (i32, i32) {
    %c0_i32 = arith.constant 0 : i32
    %c0_i32_0 = arith.constant 0 : i32
    %c0_i32_1 = arith.constant 0 : i32
    return %c0_i32, %c0_i32_0 : i32, i32
  }
  func.func @transform_5(%arg0: i32) -> (i32, i32) {
    %c0_i32 = arith.constant 0 : i32
    %c0_i32_0 = arith.constant 0 : i32
    %c0_i32_1 = arith.constant 0 : i32
    return %c0_i32, %c0_i32_0 : i32, i32
  }
  func.func @transform_6(%arg0: i32) -> (i32, i32) {
    %c0_i32 = arith.constant 0 : i32
    %c0_i32_0 = arith.constant 0 : i32
    %c0_i32_1 = arith.constant 0 : i32
    return %c0_i32, %c0_i32_0 : i32, i32
  }
  func.func @transform_7(%arg0: i32) -> (i32, i32) {
    %c0_i32 = arith.constant 0 : i32
    %c0_i32_0 = arith.constant 0 : i32
    %c0_i32_1 = arith.constant 0 : i32
    return %c0_i32, %c0_i32_0 : i32, i32
  }
  func.func @transform_8(%arg0: i32) -> (i32, i32, i32) {
    %c0_i32 = arith.constant 0 : i32
    %c0_i32_0 = arith.constant 0 : i32
    %c0_i32_1 = arith.constant 0 : i32
    return %arg0, %c0_i32, %c0_i32_0 : i32, i32, i32
  }
  func.func @transform_9(%arg0: i32) -> (i32, i32) {
    %c0_i32 = arith.constant 0 : i32
    %c0_i32_0 = arith.constant 0 : i32
    %c0_i32_1 = arith.constant 0 : i32
    return %c0_i32, %c0_i32_0 : i32, i32
  }
}

</mosaic_0001>

<llo_original>
// kernel: tpu_custom_call.1
$region0: #{tpu_custom_call.1}
  #allocation0 [shape = 'u32[]', space=smem, size = 0x4, offset = 0x4, fixed_abs, tag = 'smem constant byte address 0x4 - core index']
  #allocation1 [shape = 'u32[144,128]{1,0:T(1,128)}', space=vmem, size = 0x12000, scoped, tag = 'internal scratch']
  #allocation2 [shape = 'f32[2,128]{1,0:T(2,128)}', space=vmem, size = 0x400, scoped, tag = 'scratch operand']
  %s0 = inlined_call_operand.hbm [shape: f32[1,2,16], index: 0, kind: input, shape index: {}]
  %s1 = inlined_call_operand.hbm [shape: f32[2,8,32], index: 1, kind: input, shape index: {}]
  %s2 = inlined_call_operand.hbm [shape: bf16[2,8,128], index: 2, kind: input, shape index: {}]
  %s3 = inlined_call_operand.vmem [shape: f32[2,128], index: 3, kind: input, shape index: {}]
  %s4 = inlined_call_operand.hbm [shape: bf16[128,512], index: 4, kind: input, shape index: {}]
  %s5 = inlined_call_operand.hbm [shape: bf16[48,384], index: 5, kind: input, shape index: {}]
  %s6 = inlined_call_operand.hbm [shape: bf16[176,128], index: 6, kind: input, shape index: {}]
  %s7 = inlined_call_operand.vmem [shape: f32[5,384], index: 7, kind: input, shape index: {}]
  %s8 = inlined_call_operand.hbm [shape: f32[1,2,128], index: 8, kind: output, shape index: {0}]
  %s9 = inlined_call_operand.hbm [shape: f32[2,128], index: 9, kind: output, shape index: {1}]
  %10 = xla_tuple %s8, %s9
  %s11 = sld [smem:[#allocation0]]
  $region78: #{tpu_custom_call.1} parent=0
    _
  %s13 = ssub.s32 1, %s11
  %s14 = scalar_select 0, %s13, %s11
  $region1: #{tpu_custom_call.1} parent=0
    #allocation3 [shape = 'u8[1024]{0}', space=vmem, size = 0x400, scoped, tag = 'input window, operand 0, single buffered']
    #allocation4 [shape = 's32[1]{0}', space=sflag, size = 0x4, scoped, tag = 'scoped memory for tpu_custom_call.1']
    #allocation5 [shape = 's32[1]{0}', space=sflag, size = 0x4, scoped, tag = 'scoped memory for tpu_custom_call.1']
    #allocation6 [shape = 'u8[8192]{0}', space=vmem, size = 0x2000, scoped, tag = 'input window, operand 1, single buffered']
    #allocation7 [shape = 's32[1]{0}', space=sflag, size = 0x4, scoped, tag = 'scoped memory for tpu_custom_call.1']
    #allocation8 [shape = 'u8[4096]{0}', space=vmem, size = 0x1000, scoped, tag = 'input window, operand 2, single buffered']
    #allocation9 [shape = 'u8[131072]{0}', space=vmem, size = 0x20000, scoped, tag = 'input window, operand 4, single buffered']
    #allocation10 [shape = 's32[1]{0}', space=sflag, size = 0x4, scoped, tag = 'scoped memory for tpu_custom_call.1']
    #allocation11 [shape = 'u8[36864]{0}', space=vmem, size = 0x9000, scoped, tag = 'input window, operand 5, single buffered']
    #allocation12 [shape = 'u8[45056]{0}', space=vmem, size = 0xb000, scoped, tag = 'input window, operand 6, single buffered']
    #allocation13 [shape = 's32[1]{0}', space=sflag, size = 0x4, scoped, tag = 'scoped memory for tpu_custom_call.1']
    #allocation14 [shape = 'u8[1024]{0}', space=vmem, size = 0x400, scoped, tag = 'output window, operand 0, single buffered']
    #allocation15 [shape = 'u8[1024]{0}', space=vmem, size = 0x400, scoped, tag = 'output window, operand 1, single buffered']
    #allocation16 [shape = 's32[1]{0}', space=sflag, size = 0x4, scoped, tag = 'scoped memory for tpu_custom_call.1']
    %15 = vsyncpa [#allocation4], 0
    %16 = vsyncpa [#allocation7], 0
    %17 = vsyncpa [#allocation10], 0
    %18 = vsyncpa [#allocation13], 0
    %19 = vsyncpa [#allocation5], 0
    %20 = vsyncpa [#allocation16], 0
    // Predicated region
    $region2: #{tpu_custom_call.1} parent=1 // pred_check
      _
    $region3: #{tpu_custom_call.1} parent=1 // pred_check_branch
      %22 = sbr.rel (0) target = $region5
    $region4: #{tpu_custom_call.1} parent=1 // pred_region
      %s24 = ssub.s32 32, 32
      %25 = vsyncadd [#allocation4], %s24
      %s27 = sshll.u32 [#allocation3], 4
      %s28 = int_to_ptr.vmem [resolvable:$true] %s27
      %30 = dma.hbm_to_vmem [thread:$0]  %s0, 32, %s28, [#allocation4]
    $region5: #{tpu_custom_call.1} parent=1 // pred_fallthru
      _
    // Predicated region
    $region6: #{tpu_custom_call.1} parent=1 // pred_check
      _
    $region7: #{tpu_custom_call.1} parent=1 // pred_check_branch
      %32 = sbr.rel (0) target = $region9
    $region8: #{tpu_custom_call.1} parent=1 // pred_region
      %s34 = ssub.s32 256, 256
      %35 = vsyncadd [#allocation7], %s34
      %s36 = sshll.u32 [#allocation6], 4
      %s37 = int_to_ptr.vmem [resolvable:$true] %s36
      %42 = dma.hbm_to_vmem [thread:$0]  %s1, 256, %s37, [#allocation7], 128, 128, 8
    $region9: #{tpu_custom_call.1} parent=1 // pred_fallthru
      _
    // Predicated region
    $region10: #{tpu_custom_call.1} parent=1 // pred_check
      _
    $region11: #{tpu_custom_call.1} parent=1 // pred_check_branch
      %44 = sbr.rel (0) target = $region13
    $region12: #{tpu_custom_call.1} parent=1 // pred_region
      %s46 = ssub.s32 128, 128
      %47 = vsyncadd [#allocation7], %s46
      %s48 = sshll.u32 [#allocation8], 4
      %s49 = int_to_ptr.vmem [resolvable:$true] %s48
      %54 = dma.hbm_to_vmem [thread:$0]  %s2, 128, %s49, [#allocation7], 64, 64, 4
    $region13: #{tpu_custom_call.1} parent=1 // pred_fallthru
      _
    // Predicated region
    $region14: #{tpu_custom_call.1} parent=1 // pred_check
      _
    $region15: #{tpu_custom_call.1} parent=1 // pred_check_branch
      %56 = sbr.rel (0) target = $region17
    $region16: #{tpu_custom_call.1} parent=1 // pred_region
      _
    $region17: #{tpu_custom_call.1} parent=1 // pred_fallthru
      _
    // Predicated region
    $region18: #{tpu_custom_call.1} parent=1 // pred_check
      _
    $region19: #{tpu_custom_call.1} parent=1 // pred_check_branch
      %58 = sbr.rel (0) target = $region21
    $region20: #{tpu_custom_call.1} parent=1 // pred_region
      %s60 = ssub.s32 4096, 4096
      %61 = vsyncadd [#allocation10], %s60
      %s62 = sshll.u32 [#allocation9], 4
      %s63 = int_to_ptr.vmem [resolvable:$true] %s62
      %68 = dma.hbm_to_vmem [thread:$0]  %s4, 4096, %s63, [#allocation10], 256, 256, 16
    $region21: #{tpu_custom_call.1} parent=1 // pred_fallthru
      _
    // Predicated region
    $region22: #{tpu_custom_call.1} parent=1 // pred_check
      _
    $region23: #{tpu_custom_call.1} parent=1 // pred_check_branch
      %70 = sbr.rel (0) target = $region25
    $region24: #{tpu_custom_call.1} parent=1 // pred_region
      %s72 = ssub.s32 1152, 1152
      %73 = vsyncadd [#allocation10], %s72
      %s74 = sshll.u32 [#allocation11], 4
      %s75 = int_to_ptr.vmem [resolvable:$true] %s74
      %80 = dma.hbm_to_vmem [thread:$0]  %s5, 1152, %s75, [#allocation10], 192, 192, 12
    $region25: #{tpu_custom_call.1} parent=1 // pred_fallthru
      _
    // Predicated region
    $region26: #{tpu_custom_call.1} parent=1 // pred_check
      _
    $region27: #{tpu_custom_call.1} parent=1 // pred_check_branch
      %82 = sbr.rel (0) target = $region29
    $region28: #{tpu_custom_call.1} parent=1 // pred_region
      %s84 = ssub.s32 1408, 1408
      %85 = vsyncadd [#allocation13], %s84
      %s86 = sshll.u32 [#allocation12], 4
      %s87 = int_to_ptr.vmem [resolvable:$true] %s86
      %92 = dma.hbm_to_vmem [thread:$0]  %s6, 1408, %s87, [#allocation13], 64, 64, 4
    $region29: #{tpu_custom_call.1} parent=1 // pred_fallthru
      _
    // Predicated region
    $region30: #{tpu_custom_call.1} parent=1 // pred_check
      _
    $region31: #{tpu_custom_call.1} parent=1 // pred_check_branch
      %94 = sbr.rel (0) target = $region33
    $region32: #{tpu_custom_call.1} parent=1 // pred_region
      _
    $region33: #{tpu_custom_call.1} parent=1 // pred_fallthru
      _
    // Predicated region
    $region34: #{tpu_custom_call.1} parent=1 // pred_check
      _
    $region35: #{tpu_custom_call.1} parent=1 // pred_check_branch
      %96 = sbr.rel (0) target = $region37
    $region36: #{tpu_custom_call.1} parent=1 // pred_region
      %97 = dma.done [#allocation4], 32
    $region37: #{tpu_custom_call.1} parent=1 // pred_fallthru
      _
    // Predicated region
    $region38: #{tpu_custom_call.1} parent=1 // pred_check
      _
    $region39: #{tpu_custom_call.1} parent=1 // pred_check_branch
      %99 = sbr.rel (0) target = $region41
    $region40: #{tpu_custom_call.1} parent=1 // pred_region
      %100 = dma.done [#allocation7], 256
    $region41: #{tpu_custom_call.1} parent=1 // pred_fallthru
      _
    // Predicated region
    $region42: #{tpu_custom_call.1} parent=1 // pred_check
      _
    $region43: #{tpu_custom_call.1} parent=1 // pred_check_branch
      %102 = sbr.rel (0) target = $region45
    $region44: #{tpu_custom_call.1} parent=1 // pred_region
      %103 = dma.done [#allocation7], 128
    $region45: #{tpu_custom_call.1} parent=1 // pred_fallthru
      _
    // Predicated region
    $region46: #{tpu_custom_call.1} parent=1 // pred_check
      _
    $region47: #{tpu_custom_call.1} parent=1 // pred_check_branch
      %105 = sbr.rel (0) target = $region49
    $region48: #{tpu_custom_call.1} parent=1 // pred_region
      %106 = dma.done [#allocation10], 4096
    $region49: #{tpu_custom_call.1} parent=1 // pred_fallthru
      _
    // Predicated region
    $region50: #{tpu_custom_call.1} parent=1 // pred_check
      _
    $region51: #{tpu_custom_call.1} parent=1 // pred_check_branch
      %108 = sbr.rel (0) target = $region53
    $region52: #{tpu_custom_call.1} parent=1 // pred_region
      %109 = dma.done [#allocation10], 1152
    $region53: #{tpu_custom_call.1} parent=1 // pred_fallthru
      _
    // Predicated region
    $region54: #{tpu_custom_call.1} parent=1 // pred_check
      _
    $region55: #{tpu_custom_call.1} parent=1 // pred_check_branch
      %111 = sbr.rel (0) target = $region57
    $region56: #{tpu_custom_call.1} parent=1 // pred_region
      %112 = dma.done [#allocation13], 1408
    $region57: #{tpu_custom_call.1} parent=1 // pred_fallthru
      _
    %p114 = scmp.eq.s32.totalorder 0, 0
    // Predicated region
    $region58: #{tpu_custom_call.1} parent=1 // pred_check
      %p115 = pneg %p114
    $region59: #{tpu_custom_call.1} parent=1 // pred_check_branch
      %117 = sbr.rel (%p115) target = $region61
    $region60: #{tpu_custom_call.1} parent=1 // pred_region
      %v118 = vld [vmem:[%s3] sm:$0x3]
      %119 = vst [vmem:[#allocation2] sm:$0x3] %v118
    $region61: #{tpu_custom_call.1} parent=1 // pred_fallthru
      _
    %v120 = vld [vmem:[#allocation3] sm:$0x3]
    %v121 = vld [vmem:[#allocation2] sm:$0x3]
    %v122 = vld [vmem:[%s7] sm:$0x1f]
    %v123 = vld [vmem:[%s7 + $0x8] sm:$0x1f]
    %v124 = vld [vmem:[%s7 + $0x10] sm:$0x1f]
    %v125 = vpack.c.bf16 %v121, %v121
    %v126 = vld [vmem:[#allocation9] sm:$0xff]
    %v127 = vld [vmem:[#allocation9 + $0x8] sm:$0xff]
    %v128 = vld [vmem:[#allocation9 + $0x10] sm:$0xff]
    %v129 = vld [vmem:[#allocation9 + $0x18] sm:$0xff]
    %v130 = vld [vmem:[#allocation9 + $0x20] sm:$0xff]
    %v131 = vld [vmem:[#allocation9 + $0x28] sm:$0xff]
    %v132 = vld [vmem:[#allocation9 + $0x30] sm:$0xff]
    %v133 = vld [vmem:[#allocation9 + $0x38] sm:$0xff]
    %v134 = vld [vmem:[#allocation9 + $0x40] sm:$0xff]
    %v135 = vld [vmem:[#allocation9 + $0x48] sm:$0xff]
    %v136 = vld [vmem:[#allocation9 + $0x50] sm:$0xff]
    %v137 = vld [vmem:[#allocation9 + $0x58] sm:$0xff]
    %v138 = vld [vmem:[#allocation9 + $0x60] sm:$0xff]
    %v139 = vld [vmem:[#allocation9 + $0x68] sm:$0xff]
    %v140 = vld [vmem:[#allocation9 + $0x70] sm:$0xff]
    %v141 = vld [vmem:[#allocation9 + $0x78] sm:$0xff]
    %v142 = vld [vmem:[#allocation9 + $0x80] sm:$0xff]
    %v143 = vld [vmem:[#allocation9 + $0x88] sm:$0xff]
    %v144 = vld [vmem:[#allocation9 + $0x90] sm:$0xff]
    %v145 = vld [vmem:[#allocation9 + $0x98] sm:$0xff]
    %v146 = vld [vmem:[#allocation9 + $0xa0] sm:$0xff]
    %v147 = vld [vmem:[#allocation9 + $0xa8] sm:$0xff]
    %v148 = vld [vmem:[#allocation9 + $0xb0] sm:$0xff]
    %v149 = vld [vmem:[#allocation9 + $0xb8] sm:$0xff]
    %v150 = vld [vmem:[#allocation9 + $0xc0] sm:$0xff]
    %v151 = vld [vmem:[#allocation9 + $0xc8] sm:$0xff]
    %v152 = vld [vmem:[#allocation9 + $0xd0] sm:$0xff]
    %v153 = vld [vmem:[#allocation9 + $0xd8] sm:$0xff]
    %v154 = vld [vmem:[#allocation9 + $0xe0] sm:$0xff]
    %v155 = vld [vmem:[#allocation9 + $0xe8] sm:$0xff]
    %v156 = vld [vmem:[#allocation9 + $0xf0] sm:$0xff]
    %v157 = vld [vmem:[#allocation9 + $0xf8] sm:$0xff]
    %v190 = vunpack.c.l.b16 %v126
    %v191 = vunpack.c.h.b16 %v126
    %v192 = vunpack.c.l.b16 %v127
    %v193 = vunpack.c.h.b16 %v127
    %v194 = vunpack.c.l.b16 %v128
    %v195 = vunpack.c.h.b16 %v128
    %v196 = vunpack.c.l.b16 %v129
    %v197 = vunpack.c.h.b16 %v129
    %v198 = vunpack.c.l.b16 %v130
    %v199 = vunpack.c.h.b16 %v130
    %v200 = vunpack.c.l.b16 %v131
    %v201 = vunpack.c.h.b16 %v131
    %v202 = vunpack.c.l.b16 %v132
    %v203 = vunpack.c.h.b16 %v132
    %v204 = vunpack.c.l.b16 %v133
    %v205 = vunpack.c.h.b16 %v133
    %v206 = vunpack.c.l.b16 %v134
    %v207 = vunpack.c.h.b16 %v134
    %v208 = vunpack.c.l.b16 %v135
    %v209 = vunpack.c.h.b16 %v135
    %v210 = vunpack.c.l.b16 %v136
    %v211 = vunpack.c.h.b16 %v136
    %v212 = vunpack.c.l.b16 %v137
    %v213 = vunpack.c.h.b16 %v137
    %v214 = vunpack.c.l.b16 %v138
    %v215 = vunpack.c.h.b16 %v138
    %v216 = vunpack.c.l.b16 %v139
    %v217 = vunpack.c.h.b16 %v139
    %v218 = vunpack.c.l.b16 %v140
    %v219 = vunpack.c.h.b16 %v140
    %v220 = vunpack.c.l.b16 %v141
    %v221 = vunpack.c.h.b16 %v141
    %v222 = vunpack.c.l.b16 %v142
    %v223 = vunpack.c.h.b16 %v142
    %v224 = vunpack.c.l.b16 %v143
    %v225 = vunpack.c.h.b16 %v143
    %v226 = vunpack.c.l.b16 %v144
    %v227 = vunpack.c.h.b16 %v144
    %v228 = vunpack.c.l.b16 %v145
    %v229 = vunpack.c.h.b16 %v145
    %v230 = vunpack.c.l.b16 %v146
    %v231 = vunpack.c.h.b16 %v146
    %v232 = vunpack.c.l.b16 %v147
    %v233 = vunpack.c.h.b16 %v147
    %v234 = vunpack.c.l.b16 %v148
    %v235 = vunpack.c.h.b16 %v148
    %v236 = vunpack.c.l.b16 %v149
    %v237 = vunpack.c.h.b16 %v149
    %v238 = vunpack.c.l.b16 %v150
    %v239 = vunpack.c.h.b16 %v150
    %v240 = vunpack.c.l.b16 %v151
    %v241 = vunpack.c.h.b16 %v151
    %v242 = vunpack.c.l.b16 %v152
    %v243 = vunpack.c.h.b16 %v152
    %v244 = vunpack.c.l.b16 %v153
    %v245 = vunpack.c.h.b16 %v153
    %v246 = vunpack.c.l.b16 %v154
    %v247 = vunpack.c.h.b16 %v154
    %v248 = vunpack.c.l.b16 %v155
    %v249 = vunpack.c.h.b16 %v155
    %v250 = vunpack.c.l.b16 %v156
    %v251 = vunpack.c.h.b16 %v156
    %v252 = vunpack.c.l.b16 %v157
    %v253 = vunpack.c.h.b16 %v157
    %v254 = vpack.c.b16 %v194, %v190
    %v255 = vpack.c.b16 %v195, %v191
    %v256 = vpack.c.b16 %v196, %v192
    %v257 = vpack.c.b16 %v197, %v193
    %v258 = vpack.c.b16 %v202, %v198
    %v259 = vpack.c.b16 %v203, %v199
    %v260 = vpack.c.b16 %v204, %v200
    %v261 = vpack.c.b16 %v205, %v201
    %v262 = vpack.c.b16 %v210, %v206
    %v263 = vpack.c.b16 %v211, %v207
    %v264 = vpack.c.b16 %v212, %v208
    %v265 = vpack.c.b16 %v213, %v209
    %v266 = vpack.c.b16 %v218, %v214
    %v267 = vpack.c.b16 %v219, %v215
    %v268 = vpack.c.b16 %v220, %v216
    %v269 = vpack.c.b16 %v221, %v217
    %v270 = vpack.c.b16 %v226, %v222
    %v271 = vpack.c.b16 %v227, %v223
    %v272 = vpack.c.b16 %v228, %v224
    %v273 = vpack.c.b16 %v229, %v225
    %v274 = vpack.c.b16 %v234, %v230
    %v275 = vpack.c.b16 %v235, %v231
    %v276 = vpack.c.b16 %v236, %v232
    %v277 = vpack.c.b16 %v237, %v233
    %v278 = vpack.c.b16 %v242, %v238
    %v279 = vpack.c.b16 %v243, %v239
    %v280 = vpack.c.b16 %v244, %v240
    %v281 = vpack.c.b16 %v245, %v241
    %v282 = vpack.c.b16 %v250, %v246
    %v283 = vpack.c.b16 %v251, %v247
    %v284 = vpack.c.b16 %v252, %v248
    %v285 = vpack.c.b16 %v253, %v249
    %318 = vmatprep.subr.bf16.mxu0 %v255
    %319 = vmatpush1.bf16.msra.mxu0 %v254
    %320 = vmatprep.subr.bf16.mxu0 %v259
    %321 = vmatpush1.bf16.msra.mxu0 %v258
    %322 = vmatprep.subr.bf16.mxu0 %v263
    %323 = vmatpush1.bf16.msra.mxu0 %v262
    %324 = vmatprep.subr.bf16.mxu0 %v267
    %325 = vmatpush1.bf16.msra.mxu0 %v266
    %326 = vmatprep.subr.bf16.mxu0 %v271
    %327 = vmatpush1.bf16.msra.mxu0 %v270
    %328 = vmatprep.subr.bf16.mxu0 %v275
    %329 = vmatpush1.bf16.msra.mxu0 %v274
    %330 = vmatprep.subr.bf16.mxu0 %v279
    %331 = vmatpush1.bf16.msra.mxu0 %v278
    %332 = vmatprep.subr.bf16.mxu0 %v283
    %333 = vmatpush1.bf16.msra.mxu0 %v282
    %334 = vmatprep.subr.bf16.mxu0 0
    %335 = vmatpush1.bf16.msra.mxu0 0
    %336 = vmatprep.subr.bf16.mxu0 0
    %337 = vmatpush1.bf16.msra.mxu0 0
    %338 = vmatprep.subr.bf16.mxu0 0
    %339 = vmatpush1.bf16.msra.mxu0 0
    %340 = vmatprep.subr.bf16.mxu0 0
    %341 = vmatpush1.bf16.msra.mxu0 0
    %342 = vmatprep.subr.bf16.mxu0 0
    %343 = vmatpush1.bf16.msra.mxu0 0
    %344 = vmatprep.subr.bf16.mxu0 0
    %345 = vmatpush1.bf16.msra.mxu0 0
    %346 = vmatprep.subr.bf16.mxu0 0
    %347 = vmatpush1.bf16.msra.mxu0 0
    %348 = vmatprep.subr.bf16.mxu0 0
    %349 = vmatpush1.bf16.msra.mxu0 0
    %350 = vmatprep.mubr.bf16.mxu0 0
    %351 = vmatmul.mubr.bf16.gmra.mrb[0].mxu0 %v125
    %v352 = vpop.f32.mrb[0].mxu0
    %v353 = vadd.f32 0.0, %v352
    %v354 = vpop.f32.mrb[0].mxu0
    %v355 = vadd.f32 0.0, %v354
    %v356 = vpop.f32.mrb[0].mxu0
    %v357 = vpop.f32.mrb[0].mxu0
    %358 = vdwg.mxu0
    %359 = vmatprep.subr.bf16.mxu0 %v257
    %360 = vmatpush1.bf16.msra.mxu0 %v256
    %361 = vmatprep.subr.bf16.mxu0 %v261
    %362 = vmatpush1.bf16.msra.mxu0 %v260
    %363 = vmatprep.subr.bf16.mxu0 %v265
    %364 = vmatpush1.bf16.msra.mxu0 %v264
    %365 = vmatprep.subr.bf16.mxu0 %v269
    %366 = vmatpush1.bf16.msra.mxu0 %v268
    %367 = vmatprep.subr.bf16.mxu0 %v273
    %368 = vmatpush1.bf16.msra.mxu0 %v272
    %369 = vmatprep.subr.bf16.mxu0 %v277
    %370 = vmatpush1.bf16.msra.mxu0 %v276
    %371 = vmatprep.subr.bf16.mxu0 %v281
    %372 = vmatpush1.bf16.msra.mxu0 %v280
    %373 = vmatprep.subr.bf16.mxu0 %v285
    %374 = vmatpush1.bf16.msra.mxu0 %v284
    %375 = vmatprep.subr.bf16.mxu0 0
    %376 = vmatpush1.bf16.msra.mxu0 0
    %377 = vmatprep.subr.bf16.mxu0 0
    %378 = vmatpush1.bf16.msra.mxu0 0
    %379 = vmatprep.subr.bf16.mxu0 0
    %380 = vmatpush1.bf16.msra.mxu0 0
    %381 = vmatprep.subr.bf16.mxu0 0
    %382 = vmatpush1.bf16.msra.mxu0 0
    %383 = vmatprep.subr.bf16.mxu0 0
    %384 = vmatpush1.bf16.msra.mxu0 0
    %385 = vmatprep.subr.bf16.mxu0 0
    %386 = vmatpush1.bf16.msra.mxu0 0
    %387 = vmatprep.subr.bf16.mxu0 0
    %388 = vmatpush1.bf16.msra.mxu0 0
    %389 = vmatprep.subr.bf16.mxu0 0
    %390 = vmatpush1.bf16.msra.mxu0 0
    %391 = vmatprep.mubr.bf16.mxu0 0
    %392 = vmatmul.mubr.bf16.gmra.mrb[0].mxu0 %v125
    %v393 = vpop.f32.mrb[0].mxu0
    %v394 = vadd.f32 0.0, %v393
    %v395 = vpop.f32.mrb[0].mxu0
    %v396 = vadd.f32 0.0, %v395
    %v397 = vpop.f32.mrb[0].mxu0
    %v398 = vpop.f32.mrb[0].mxu0
    %399 = vdwg.mxu0
    %v400 = vlaneseq
    %v401 = vshrl.u32 %v400, 7
    %v402 = vsub.s32 3, %v401
    %v403 = vrot.slane %v122, %v402
    %v404 = vlaneseq
    %v405 = vshrl.u32 %v404, 7
    %v406 = vsub.s32 3, %v405
    %v407 = vrot.slane %v123, %v406
    %v408 = vlaneseq
    %v409 = vshrl.u32 %v408, 7
    %v410 = vsub.s32 3, %v409
    %v411 = vrot.slane %v124, %v410
    %v412 = vadd.f32 %v355, %v403
    %v413 = vadd.f32 %v394, %v407
    %v414 = vadd.f32 %v396, %v411
    %v415 = vld [vmem:[#allocation8] sm:$0xf]
    %v416 = vld [vmem:[#allocation8 + $0x4] sm:$0xf]
    %v417 = vunpack.c.l.bf16 %v415
    %v418 = vunpack.c.l.bf16 %v416
    %v421 = vunpack.c.l.s4 1966171168
    %v422 = vunpack.c.0.s8 %v421
    %v423 = vlaneseq
    %v424 = vshrl.u32 %v423, 7
    %v425 = vsub.s32 %v422, %v424
    %v426 = vrot.slane %v353, %v425
    %v427 = vcombine.high %v426, %v426
    %v429 = vunpack.c.l.s4 1966171168
    %v430 = vunpack.c.0.s8 %v429
    %v431 = vlaneseq
    %v432 = vshrl.u32 %v431, 7
    %v433 = vsub.s32 %v430, %v432
    %v434 = vrot.slane %v426, %v433
    %v436 = vunpack.c.l.s4 1966171168
    %v437 = vunpack.c.0.s8 %v436
    %v438 = vlaneseq
    %v439 = vshrl.u32 %v438, 7
    %v440 = vsub.s32 %v437, %v439
    %v441 = vrot.slane %v427, %v440
    %v442 = vlaneseq
    %v443 = vshrl.u32 %v442, 7
    %v444 = vsub.s32 0, %v443
    %v445 = vrot.slane %v434, %v444
    %v446 = vlaneseq
    %v447 = vshrl.u32 %v446, 7
    %v448 = vsub.s32 0, %v447
    %v449 = vrot.slane %v441, %v448
    %v452 = vadd.f32 %v417, %v445
    %v453 = vadd.f32 %v418, %v449
    %v454 = vlaneseq
    %v455 = vshrl.u32 %v454, 7
    %v456 = vsub.s32 0, %v455
    %v457 = vrot.slane %v122, %v456
    %v458 = vadd.f32 %v452, %v457
    %v459 = vadd.f32 %v453, %v457
    %v460 = vtanh.pop %v458
    %v461 = vtanh.pop %v459
    %v462 = vlaneseq
    %v463 = vshrl.u32 %v462, 7
    %v464 = vsub.s32 1, %v463
    %v465 = vrot.slane %v122, %v464
    %v466 = vmul.f32 %v460, %v465
    %v467 = vmul.f32 %v461, %v465
    %468 = vadd.xlane.f32.xlu0 %v466
    %v469 = vpop.xlane.xlu0 %468
    %470 = vadd.xlane.f32.xlu0 %v467
    %v471 = vpop.xlane.xlu0 %470
    %v474 = vlaneseq
    %v475 = vand.u32 %v474, 127
    %v476 = vlaneseq
    %v477 = vshrl.u32 %v476, 7
    %v478 = vsub.s32 %v475, %v477
    %v479 = vrot.slane %v469, %v478
    %v480 = vlaneseq
    %v481 = vshrl.u32 %v480, 7
    %v482 = vsub.s32 %v475, %v481
    %v483 = vrot.slane %v471, %v482
    %vm484 = vcmask 1041409
    %v485 = vsel %vm484, %v483, %v479
    %vm487 = vcmask 58368
    %v488 = vsel %vm487, %v485, -inf
    %489 = vmax.xlane.f32.xlu0 %v488
    %v490 = vpop.xlane.xlu0 %489
    %v492 = vlaneseq
    %v493 = vshrl.u32 %v492, 7
    %v494 = vsub.s32 0, %v493
    %v495 = vrot.slane %v490, %v494
    %v496 = vlaneseq
    %v497 = vshrl.u32 %v496, 7
    %v498 = vsub.s32 1, %v497
    %v499 = vrot.slane %v490, %v498
    %v502 = vsub.f32 %v469, %v495
    %v503 = vsub.f32 %v471, %v499
    %v504 = vmul.f32 %v502, 1.442695
    %v505 = vpow.pop %v504
    %v506 = vmul.f32 %v503, 1.442695
    %v507 = vpow.pop %v506
    %510 = vset.pattern.permute.xlu0 0
    %511 = vperm.xlu0 %510, %v505
    %v512 = vpop.permute.xlu0 %511
    %513 = vset.pattern.permute.xlu0 0
    %514 = vperm.xlu0 %513, %v507
    %v515 = vpop.permute.xlu0 %514
    %v516 = vlaneseq
    %v517 = vshrl.u32 %v516, 7
    %v518 = vsub.s32 %v475, %v517
    %v519 = vrot.slane %v512, %v518
    %v520 = vlaneseq
    %v521 = vshrl.u32 %v520, 7
    %v522 = vsub.s32 %v475, %v521
    %v523 = vrot.slane %v515, %v522
    %v524 = vsel %vm484, %v523, %v519
    %v526 = vsel %vm487, %v524, 0.0
    %527 = vadd.xlane.f32.xlu0 %v526
    %v528 = vpop.xlane.xlu0 %527
    %v529 = vrcp.pop %v528
    %v531 = vlaneseq
    %v532 = vshrl.u32 %v531, 7
    %v533 = vsub.s32 0, %v532
    %v534 = vrot.slane %v529, %v533
    %v535 = vlaneseq
    %v536 = vshrl.u32 %v535, 7
    %v537 = vsub.s32 1, %v536
    %v538 = vrot.slane %v529, %v537
    %v541 = vmul.f32 %v505, %v534
    %v542 = vmul.f32 %v507, %v538
    %v543 = vld [vmem:[#allocation6] sm:$0xff]
    %v544 = vld [vmem:[#allocation6 + $0x8] sm:$0xff]
    %546 = vset.pattern.permute.xlu0 0
    %547 = vperm.xlu0 %546, %v541
    %v548 = vpop.permute.xlu0 %547
    %551 = vset.pattern.permute.xlu0 0
    %552 = vperm.xlu0 %551, %v542
    %v553 = vpop.permute.xlu0 %552
    %v555 = vmul.f32 %v548, %v543
    %v556 = vmul.f32 %v553, %v544
    %vm557 = vcmask 261120
    %v558 = vsel %vm557, %v555, 0.0
    %v559 = vrot.slane %v558, 4
    %v560 = vadd.f32 %v558, %v559
    %v561 = vrot.slane %v560, 2
    %v562 = vadd.f32 %v560, %v561
    %v563 = vrot.slane %v562, 1
    %v564 = vadd.f32 %v562, %v563
    %v565 = vsel %vm557, %v556, 0.0
    %v566 = vrot.slane %v565, 4
    %v567 = vadd.f32 %v565, %v566
    %v568 = vrot.slane %v567, 2
    %v569 = vadd.f32 %v567, %v568
    %v570 = vrot.slane %v569, 1
    %v571 = vadd.f32 %v569, %v570
    %v574 = vsel %vm484, %v571, %v564
    %575 = vrot.lane.b32.xlu0 %v574, 16
    %v576 = vpop.permute.xlu0 %575
    %vm578 = vcmask 130048
    %v579 = vsel %vm578, %v120, %v576
    %v580 = vpack.c.bf16 %v579, %v579
    %v581 = vld [vmem:[#allocation11] sm:$0xff]
    %v582 = vld [vmem:[#allocation11 + $0x8] sm:$0xf]
    %v583 = vld [vmem:[#allocation11 + $0xc] sm:$0xff]
    %v584 = vld [vmem:[#allocation11 + $0x14] sm:$0xf]
    %v585 = vld [vmem:[#allocation11 + $0x18] sm:$0xff]
    %v586 = vld [vmem:[#allocation11 + $0x20] sm:$0xf]
    %v587 = vld [vmem:[#allocation11 + $0x24] sm:$0xff]
    %v588 = vld [vmem:[#allocation11 + $0x2c] sm:$0xf]
    %v589 = vld [vmem:[#allocation11 + $0x30] sm:$0xff]
    %v590 = vld [vmem:[#allocation11 + $0x38] sm:$0xf]
    %v591 = vld [vmem:[#allocation11 + $0x3c] sm:$0xff]
    %v592 = vld [vmem:[#allocation11 + $0x44] sm:$0xf]
    %v593 = vlaneseq
    %v594 = vshrl.u32 %v593, 7
    %v595 = vsub.s32 2, %v594
    %v596 = vrot.slane %v122, %v595
    %v597 = vlaneseq
    %v598 = vshrl.u32 %v597, 7
    %v599 = vsub.s32 2, %v598
    %v600 = vrot.slane %v123, %v599
    %v601 = vlaneseq
    %v602 = vshrl.u32 %v601, 7
    %v603 = vsub.s32 2, %v602
    %v604 = vrot.slane %v124, %v603
    %v617 = vunpack.c.l.b16 %v581
    %v618 = vunpack.c.h.b16 %v581
    %v619 = vunpack.c.l.b16 %v582
    %v620 = vunpack.c.l.b16 %v583
    %v621 = vunpack.c.h.b16 %v583
    %v622 = vunpack.c.l.b16 %v584
    %v623 = vunpack.c.l.b16 %v585
    %v624 = vunpack.c.h.b16 %v585
    %v625 = vunpack.c.l.b16 %v586
    %v626 = vunpack.c.l.b16 %v587
    %v627 = vunpack.c.h.b16 %v587
    %v628 = vunpack.c.l.b16 %v588
    %v629 = vunpack.c.l.b16 %v589
    %v630 = vunpack.c.h.b16 %v589
    %v631 = vunpack.c.l.b16 %v590
    %v632 = vunpack.c.l.b16 %v591
    %v633 = vunpack.c.h.b16 %v591
    %v634 = vunpack.c.l.b16 %v592
    %v635 = vpack.c.b16 %v620, %v617
    %v636 = vpack.c.b16 %v621, %v618
    %v637 = vpack.c.b16 %v622, %v619
    %v638 = vpack.c.b16 %v626, %v623
    %v639 = vpack.c.b16 %v627, %v624
    %v640 = vpack.c.b16 %v628, %v625
    %v641 = vpack.c.b16 %v632, %v629
    %v642 = vpack.c.b16 %v633, %v630
    %v643 = vpack.c.b16 %v634, %v631
    %vm653 = vcmask 392192
    %v655 = vsel %vm653, %v580, 0
    %657 = vmatprep.subr.bf16.mxu0 %v636
    %658 = vmatpush1.bf16.msra.mxu0 %v635
    %659 = vmatprep.subr.bf16.mxu0 %v639
    %660 = vmatpush1.bf16.msra.mxu0 %v638
    %661 = vmatprep.subr.bf16.mxu0 %v642
    %662 = vmatpush1.bf16.msra.mxu0 %v641
    %663 = vmatprep.subr.bf16.mxu0 0
    %664 = vmatpush1.bf16.msra.mxu0 0
    %665 = vmatprep.subr.bf16.mxu0 0
    %666 = vmatpush1.bf16.msra.mxu0 0
    %667 = vmatprep.subr.bf16.mxu0 0
    %668 = vmatpush1.bf16.msra.mxu0 0
    %669 = vmatprep.subr.bf16.mxu0 0
    %670 = vmatpush1.bf16.msra.mxu0 0
    %671 = vmatprep.subr.bf16.mxu0 0
    %672 = vmatpush1.bf16.msra.mxu0 0
    %673 = vmatprep.subr.bf16.mxu0 0
    %674 = vmatpush1.bf16.msra.mxu0 0
    %675 = vmatprep.subr.bf16.mxu0 0
    %676 = vmatpush1.bf16.msra.mxu0 0
    %677 = vmatprep.subr.bf16.mxu0 0
    %678 = vmatpush1.bf16.msra.mxu0 0
    %679 = vmatprep.subr.bf16.mxu0 0
    %680 = vmatpush1.bf16.msra.mxu0 0
    %681 = vmatprep.subr.bf16.mxu0 0
    %682 = vmatpush1.bf16.msra.mxu0 0
    %683 = vmatprep.subr.bf16.mxu0 0
    %684 = vmatpush1.bf16.msra.mxu0 0
    %685 = vmatprep.subr.bf16.mxu0 0
    %686 = vmatpush1.bf16.msra.mxu0 0
    %687 = vmatprep.subr.bf16.mxu0 0
    %688 = vmatpush1.bf16.msra.mxu0 0
    %689 = vmatprep.mubr.bf16.mxu0 0
    %690 = vmatmul.mubr.bf16.gmra.mrb[0].mxu0 %v655
    %v691 = vpop.f32.mrb[0].mxu0
    %v692 = vadd.f32 %v596, %v691
    %v693 = vpop.f32.mrb[0].mxu0
    %v694 = vadd.f32 %v600, %v693
    %v695 = vpop.f32.mrb[0].mxu0
    %v696 = vpop.f32.mrb[0].mxu0
    %697 = vdwg.mxu0
    %698 = vmatprep.subr.bf16.mxu0 0
    %699 = vmatpush1.bf16.msra.mxu0 %v637
    %700 = vmatprep.subr.bf16.mxu0 0
    %701 = vmatpush1.bf16.msra.mxu0 %v640
    %702 = vmatprep.subr.bf16.mxu0 0
    %703 = vmatpush1.bf16.msra.mxu0 %v643
    %704 = vmatprep.subr.bf16.mxu0 0
    %705 = vmatpush1.bf16.msra.mxu0 0
    %706 = vmatprep.subr.bf16.mxu0 0
    %707 = vmatpush1.bf16.msra.mxu0 0
    %708 = vmatprep.subr.bf16.mxu0 0
    %709 = vmatpush1.bf16.msra.mxu0 0
    %710 = vmatprep.subr.bf16.mxu0 0
    %711 = vmatpush1.bf16.msra.mxu0 0
    %712 = vmatprep.subr.bf16.mxu0 0
    %713 = vmatpush1.bf16.msra.mxu0 0
    %714 = vmatprep.subr.bf16.mxu0 0
    %715 = vmatpush1.bf16.msra.mxu0 0
    %716 = vmatprep.subr.bf16.mxu0 0
    %717 = vmatpush1.bf16.msra.mxu0 0
    %718 = vmatprep.subr.bf16.mxu0 0
    %719 = vmatpush1.bf16.msra.mxu0 0
    %720 = vmatprep.subr.bf16.mxu0 0
    %721 = vmatpush1.bf16.msra.mxu0 0
    %722 = vmatprep.subr.bf16.mxu0 0
    %723 = vmatpush1.bf16.msra.mxu0 0
    %724 = vmatprep.subr.bf16.mxu0 0
    %725 = vmatpush1.bf16.msra.mxu0 0
    %726 = vmatprep.subr.bf16.mxu0 0
    %727 = vmatpush1.bf16.msra.mxu0 0
    %728 = vmatprep.subr.bf16.mxu0 0
    %729 = vmatpush1.bf16.msra.mxu0 0
    %730 = vmatprep.mubr.bf16.mxu0 0
    %731 = vmatmul.mubr.bf16.gmra.mrb[0].mxu0 %v655
    %v732 = vpop.f32.mrb[0].mxu0
    %v733 = vadd.f32 %v604, %v732
    %v734 = vpop.f32.mrb[0].mxu0
    %v735 = vpop.f32.mrb[0].mxu0
    %v736 = vpop.f32.mrb[0].mxu0
    %737 = vdwg.mxu0
    %v738 = vadd.f32 %v692, %v412
    %v739 = vxor.u32 %v738, 2147483648
    %v740 = vmul.f32 %v739, 1.442695
    %v741 = vpow.pop %v740
    %v742 = vadd.f32 %v741, 1.0
    %v743 = vrcp.pop %v742
    %v744 = vmul.f32 1.0, %v743
    %v745 = vadd.f32 %v694, %v413
    %v746 = vxor.u32 %v745, 2147483648
    %v747 = vmul.f32 %v746, 1.442695
    %v748 = vpow.pop %v747
    %v749 = vadd.f32 %v748, 1.0
    %v750 = vrcp.pop %v749
    %v751 = vmul.f32 1.0, %v750
    %v752 = vmul.f32 %v744, %v414
    %v753 = vadd.f32 %v733, %v752
    %v754 = vtanh.pop %v753
    %v755 = vsub.f32 1.0, %v751
    %v756 = vmul.f32 %v755, %v754
    %v757 = vmul.f32 %v751, %v121
    %v758 = vadd.f32 %v756, %v757
    %761 = vrot.lane.b32.xlu0 %v120, 32
    %v762 = vpop.permute.xlu0 %761
    %v764 = vsel %vm557, %v574, %v762
    %v765 = vpack.c.bf16 %v758, %v758
    %v766 = vpack.c.bf16 %v764, %v764
    %v767 = vld [vmem:[#allocation12] sm:$0xf]
    %v768 = vld [vmem:[#allocation12 + $0x4] sm:$0xf]
    %v769 = vld [vmem:[#allocation12 + $0x8] sm:$0xf]
    %v770 = vld [vmem:[#allocation12 + $0xc] sm:$0xf]
    %v771 = vld [vmem:[#allocation12 + $0x10] sm:$0xf]
    %v772 = vld [vmem:[#allocation12 + $0x14] sm:$0xf]
    %v773 = vld [vmem:[#allocation12 + $0x18] sm:$0xf]
    %v774 = vld [vmem:[#allocation12 + $0x1c] sm:$0xf]
    %v775 = vld [vmem:[#allocation12 + $0x20] sm:$0xf]
    %v776 = vld [vmem:[#allocation12 + $0x24] sm:$0xf]
    %v777 = vld [vmem:[#allocation12 + $0x28] sm:$0xf]
    %v778 = vld [vmem:[#allocation12 + $0x2c] sm:$0xf]
    %v779 = vld [vmem:[#allocation12 + $0x30] sm:$0xf]
    %v780 = vld [vmem:[#allocation12 + $0x34] sm:$0xf]
    %v781 = vld [vmem:[#allocation12 + $0x38] sm:$0xf]
    %v782 = vld [vmem:[#allocation12 + $0x3c] sm:$0xf]
    %v783 = vld [vmem:[#allocation12 + $0x40] sm:$0xf]
    %v784 = vld [vmem:[#allocation12 + $0x44] sm:$0xf]
    %v785 = vld [vmem:[#allocation12 + $0x48] sm:$0xf]
    %v786 = vld [vmem:[#allocation12 + $0x4c] sm:$0xf]
    %v787 = vld [vmem:[#allocation12 + $0x50] sm:$0xf]
    %v788 = vld [vmem:[#allocation12 + $0x54] sm:$0xf]
    %v789 = vlaneseq
    %v790 = vshrl.u32 %v789, 7
    %v791 = vsub.s32 4, %v790
    %v792 = vrot.slane %v122, %v791
    %v815 = vunpack.c.l.b16 %v767
    %v816 = vunpack.c.l.b16 %v768
    %v817 = vunpack.c.l.b16 %v769
    %v818 = vunpack.c.l.b16 %v770
    %v819 = vunpack.c.l.b16 %v771
    %v820 = vunpack.c.l.b16 %v772
    %v821 = vunpack.c.l.b16 %v773
    %v822 = vunpack.c.l.b16 %v774
    %v823 = vunpack.c.l.b16 %v775
    %v824 = vunpack.c.l.b16 %v776
    %v825 = vunpack.c.l.b16 %v777
    %v826 = vunpack.c.l.b16 %v778
    %v827 = vunpack.c.l.b16 %v779
    %v828 = vunpack.c.l.b16 %v780
    %v829 = vunpack.c.l.b16 %v781
    %v830 = vunpack.c.l.b16 %v782
    %v831 = vunpack.c.l.b16 %v783
    %v832 = vunpack.c.l.b16 %v784
    %v833 = vunpack.c.l.b16 %v785
    %v834 = vunpack.c.l.b16 %v786
    %v835 = vunpack.c.l.b16 %v787
    %v836 = vunpack.c.l.b16 %v788
    %v837 = vpack.c.b16 %v816, %v815
    %v838 = vpack.c.b16 %v818, %v817
    %v839 = vpack.c.b16 %v820, %v819
    %v840 = vpack.c.b16 %v822, %v821
    %v841 = vpack.c.b16 %v824, %v823
    %v842 = vpack.c.b16 %v826, %v825
    %v843 = vpack.c.b16 %v828, %v827
    %v844 = vpack.c.b16 %v830, %v829
    %v845 = vpack.c.b16 %v832, %v831
    %v846 = vpack.c.b16 %v834, %v833
    %v847 = vpack.c.b16 %v836, %v835
    %v860 = vsel %vm653, %v766, 0
    %862 = vmatprep.subr.bf16.mxu0 0
    %863 = vmatpush1.bf16.msra.mxu0 %v837
    %864 = vmatprep.subr.bf16.mxu0 0
    %865 = vmatpush1.bf16.msra.mxu0 %v838
    %866 = vmatprep.subr.bf16.mxu0 0
    %867 = vmatpush1.bf16.msra.mxu0 %v839
    %868 = vmatprep.subr.bf16.mxu0 0
    %869 = vmatpush1.bf16.msra.mxu0 %v840
    %870 = vmatprep.subr.bf16.mxu0 0
    %871 = vmatpush1.bf16.msra.mxu0 %v841
    %872 = vmatprep.subr.bf16.mxu0 0
    %873 = vmatpush1.bf16.msra.mxu0 %v842
    %874 = vmatprep.subr.bf16.mxu0 0
    %875 = vmatpush1.bf16.msra.mxu0 %v843
    %876 = vmatprep.subr.bf16.mxu0 0
    %877 = vmatpush1.bf16.msra.mxu0 %v844
    %878 = vmatprep.subr.bf16.mxu0 0
    %879 = vmatpush1.bf16.msra.mxu0 %v845
    %880 = vmatprep.subr.bf16.mxu0 0
    %881 = vmatpush1.bf16.msra.mxu0 %v846
    %882 = vmatprep.subr.bf16.mxu0 0
    %883 = vmatpush1.bf16.msra.mxu0 %v847
    %884 = vmatprep.subr.bf16.mxu0 0
    %885 = vmatpush1.bf16.msra.mxu0 0
    %886 = vmatprep.subr.bf16.mxu0 0
    %887 = vmatpush1.bf16.msra.mxu0 0
    %888 = vmatprep.subr.bf16.mxu0 0
    %889 = vmatpush1.bf16.msra.mxu0 0
    %890 = vmatprep.subr.bf16.mxu0 0
    %891 = vmatpush1.bf16.msra.mxu0 0
    %892 = vmatprep.subr.bf16.mxu0 0
    %893 = vmatpush1.bf16.msra.mxu0 0
    %894 = vmatprep.mubr.bf16.mxu0 %v860
    %895 = vmatmul.mubr.bf16.gmra.mrb[0].mxu0 %v765
    %v896 = vpop.f32.mrb[0].mxu0
    %v897 = vadd.f32 %v792, %v896
    %v898 = vpop.f32.mrb[0].mxu0
    %v899 = vpop.f32.mrb[0].mxu0
    %v900 = vpop.f32.mrb[0].mxu0
    %901 = vdwg.mxu0
    %902 = vst [vmem:[#allocation14] sm:$0x3] %v897
    %903 = vst [vmem:[#allocation2] sm:$0x3] %v758
    %904 = vst [vmem:[#allocation15] sm:$0x3] %v758
    // Predicated region
    $region62: #{tpu_custom_call.1} parent=1 // pred_check
      _
    $region63: #{tpu_custom_call.1} parent=1 // pred_check_branch
      %906 = sbr.rel (0) target = $region65
    $region64: #{tpu_custom_call.1} parent=1 // pred_region
      %s908 = ssub.s32 32, 32
      %909 = vsyncadd [#allocation5], %s908
      %s911 = sshll.u32 [#allocation14], 4
      %s912 = int_to_ptr.vmem [resolvable:$true] %s911
      %914 = dma.vmem_to_hbm [thread:$0]  %s912, 32, %s8, [#allocation5]
    $region65: #{tpu_custom_call.1} parent=1 // pred_fallthru
      _
    // Predicated region
    $region66: #{tpu_custom_call.1} parent=1 // pred_check
      _
    $region67: #{tpu_custom_call.1} parent=1 // pred_check_branch
      %916 = sbr.rel (0) target = $region69
    $region68: #{tpu_custom_call.1} parent=1 // pred_region
      %s918 = ssub.s32 32, 32
      %919 = vsyncadd [#allocation16], %s918
      %s921 = sshll.u32 [#allocation15], 4
      %s922 = int_to_ptr.vmem [resolvable:$true] %s921
      %924 = dma.vmem_to_hbm [thread:$0]  %s922, 32, %s9, [#allocation16]
    $region69: #{tpu_custom_call.1} parent=1 // pred_fallthru
      _
    // Predicated region
    $region70: #{tpu_custom_call.1} parent=1 // pred_check
      _
    $region71: #{tpu_custom_call.1} parent=1 // pred_check_branch
      %926 = sbr.rel (0) target = $region73
    $region72: #{tpu_custom_call.1} parent=1 // pred_region
      %927 = dma.done [#allocation5], 32
    $region73: #{tpu_custom_call.1} parent=1 // pred_fallthru
      _
    // Predicated region
    $region74: #{tpu_custom_call.1} parent=1 // pred_check
      _
    $region75: #{tpu_custom_call.1} parent=1 // pred_check_branch
      %929 = sbr.rel (0) target = $region77
    $region76: #{tpu_custom_call.1} parent=1 // pred_region
      %930 = dma.done [#allocation16], 32
    $region77: #{tpu_custom_call.1} parent=1 // pred_fallthru
      _
    %931 = vsyncpa [#allocation4], 1
    %932 = vsyncpa [#allocation7], 1
    %933 = vsyncpa [#allocation10], 1
    %934 = vsyncpa [#allocation13], 1
    %935 = vsyncpa [#allocation5], 1
    %936 = vsyncpa [#allocation16], 1

</llo_original>
